<compile_context>
chip_gen: v6e
topology: v6e:2x2x1
jax: 0.10.0
libtpu: 0.0.40
codegen_flags: <defaults>
</compile_context>

<pallas_src>
import jax
import jax.numpy as jnp
from jax.experimental import pallas as pl
from jax.experimental.pallas import tpu as pltpu

HIDDEN = 128


def _round_up(n, m):
    return ((n + m - 1) // m) * m


def _pick_batch_tile(batch, d):
    """Batch tile: big enough to fill the MXU M dim (128/256 rows) and amortize the
    per-grid-step overhead, small enough that the double-buffered x tile stays well
    inside VMEM (v7x has only 64 MiB physical / 32 MiB scoped default)."""
    tb = min(512, _round_up(batch, 8))
    if tb >= batch and 2 * tb * d * 4 <= (8 << 20):
        return tb                           # single exact tile
    tb = 512                                # multi-tile path: keep tb a multiple of 128
    while tb > 128 and 2 * tb * d * 4 > (8 << 20):
        tb //= 2
    # TODO(synk): for D in the tens of thousands, add a K-reduction grid axis
    #             ("arbitrary") with an f32 accumulator scratch instead of shrinking TB.
    return tb


def _mlp_kernel(x_ref, w_in_ref, b_in_ref, w1_ref, b1_ref, w_out_ref, b_out_ref, o_ref):
    # Whole forward pass for one (TB, D) batch tile; all matmuls hit the MXU with f32 acc.
    x = x_ref[...]                                     # (TB, D)
    w1 = w1_ref[...]                                   # (H, H) -- read once, reused 3x
    b1 = b1_ref[...]                                   # (1, H)

    h = jnp.dot(x, w_in_ref[...], preferred_element_type=jnp.float32) + b_in_ref[...]
    h = jnp.maximum(h, 0.0)                            # relu(input(x))

    for _ in range(3):                                 # the SAME linear1 applied 3x
        h = jnp.maximum(jnp.dot(h, w1, preferred_element_type=jnp.float32) + b1, 0.0)

    # Lane-dense output: contract the (1, H) output-weight row against the feature axis
    # of h -> (1, TB).  Last dim = TB (>=128 when multi-tile) keeps the store unmasked
    # and cuts HBM writeback ~128x vs a padded (TB, 128) output.
    o = jnp.einsum("of,bf->ob", w_out_ref[...], h, preferred_element_type=jnp.float32)
    o_ref[...] = o + b_out_ref[0, 0]


def perceptron_forward(x, params):
    """x: (B, D) float32.  Returns (B, 1) float32 (computed in f32, not f64)."""
    w_in, b_in, w1, b1, w_out, b_out = params
    b, d = x.shape

    tb = _pick_batch_tile(b, d)
    num_tiles = pl.cdiv(b, tb)

    # (128, 1) -> (1, 128) so the final contraction emits a lane-dense (1, TB) row.
    w_out_t = jnp.transpose(w_out)

    out = pl.pallas_call(
        _mlp_kernel,
        out_shape=jax.ShapeDtypeStruct((1, num_tiles * tb), jnp.float32),
        grid=(num_tiles,),
        in_specs=[
            pl.BlockSpec((tb, d), lambda i: (i, 0)),            # x tile (partial last block OK)
            pl.BlockSpec((d, HIDDEN), lambda i: (0, 0)),        # input weight (resident)
            pl.BlockSpec((1, HIDDEN), lambda i: (0, 0)),        # input bias
            pl.BlockSpec((HIDDEN, HIDDEN), lambda i: (0, 0)),   # linear1 weight (resident)
            pl.BlockSpec((1, HIDDEN), lambda i: (0, 0)),        # linear1 bias
            pl.BlockSpec((1, HIDDEN), lambda i: (0, 0)),        # output weight row
            pl.BlockSpec((1, 1), lambda i: (0, 0)),             # output bias (scalar)
        ],
        out_specs=pl.BlockSpec((1, tb), lambda i: (0, i)),
        compiler_params=pltpu.CompilerParams(
            dimension_semantics=("parallel",),   # shards batch tiles across v7x's 2 TCs
        ),
    )(x, w_in, b_in, w1, b1, w_out_t, b_out)

    return out[0, :b].reshape(b, 1)


def init_params(key, input_size):
    """Deterministic init mimicking nn.Linear defaults: U(-1/sqrt(fan_in), 1/sqrt(fan_in))."""
    ks = jax.random.split(key, 6)

    def lin(kw, kb, fan_in, fan_out):
        bound = 1.0 / jnp.sqrt(fan_in)
        w = jax.random.uniform(kw, (fan_in, fan_out), jnp.float32, -bound, bound)
        b = jax.random.uniform(kb, (1, fan_out), jnp.float32, -bound, bound)
        return w, b

    w_in, b_in = lin(ks[0], ks[1], input_size, HIDDEN)
    w1, b1 = lin(ks[2], ks[3], HIDDEN, HIDDEN)
    w_out, b_out = lin(ks[4], ks[5], HIDDEN, 1)
    return (w_in, b_in, w1, b1, w_out, b_out)


def reference_forward(x, params):
    w_in, b_in, w1, b1, w_out, b_out = params
    h = jnp.maximum(x @ w_in + b_in, 0.0)
    for _ in range(3):
        h = jnp.maximum(h @ w1 + b1, 0.0)
    return h @ w_out + b_out


if __name__ == "__main__":
    key = jax.random.PRNGKey(0)
    k_x, k_p = jax.random.split(key)

    input_size = 32
    params = init_params(k_p, input_size)

    # Small case: single exact tile.
    x_small = jax.random.normal(k_x, (8, input_size), jnp.float32)
    out_small = jax.block_until_ready(perceptron_forward(x_small, params))
    ref_small = reference_forward(x_small, params)
    assert out_small.shape == (8, 1), out_small.shape
    assert jnp.allclose(out_small, ref_small, atol=1e-4, rtol=1e-4), "small-batch mismatch"

    # Larger case: exercises TB=512, a 2-step grid, and the masked partial last block.
    x_big = jax.random.normal(k_x, (1000, input_size), jnp.float32)
    out_big = jax.block_until_ready(perceptron_forward(x_big, params))
    ref_big = reference_forward(x_big, params)
    assert out_big.shape == (1000, 1), out_big.shape
    assert jnp.allclose(out_big, ref_big, atol=1e-4, rtol=1e-4), "large-batch mismatch"

    print("KERNEL_OK")
</pallas_src>

<mosaic_0001>
module attributes {stable_mosaic.version = 11 : i64} {
  func.func @_mlp_kernel(%arg0: i32, %arg1: memref<8x32xf32, #tpu.memory_space<vmem>>, %arg2: memref<32x128xf32, #tpu.memory_space<vmem>>, %arg3: memref<1x128xf32, #tpu.memory_space<vmem>>, %arg4: memref<128x128xf32, #tpu.memory_space<vmem>>, %arg5: memref<1x128xf32, #tpu.memory_space<vmem>>, %arg6: memref<1x128xf32, #tpu.memory_space<vmem>>, %arg7: memref<1x1xf32, #tpu.memory_space<vmem>>, %arg8: memref<1x8xf32, #tpu.memory_space<vmem>>) attributes {dimension_semantics = [#tpu.dimension_semantics<parallel>], iteration_bounds = array<i64: 1>, scalar_prefetch = 0 : i64, scratch_operands = 0 : i64, tpu.core_type = #tpu.core_type<tc>, window_params = [{transform_indices = @transform_0, window_bounds = array<i64: 8, 32>}, {pipeline_mode = #tpu.pipeline_mode<synchronous>, transform_indices = @transform_1, window_bounds = array<i64: 32, 128>}, {pipeline_mode = #tpu.pipeline_mode<synchronous>, transform_indices = @transform_2, window_bounds = array<i64: 1, 128>}, {pipeline_mode = #tpu.pipeline_mode<synchronous>, transform_indices = @transform_3, window_bounds = array<i64: 128, 128>}, {pipeline_mode = #tpu.pipeline_mode<synchronous>, transform_indices = @transform_4, window_bounds = array<i64: 1, 128>}, {pipeline_mode = #tpu.pipeline_mode<synchronous>, transform_indices = @transform_5, window_bounds = array<i64: 1, 128>}, {pipeline_mode = #tpu.pipeline_mode<synchronous>, transform_indices = @transform_6, window_bounds = array<i64: 1, 1>}, {transform_indices = @transform_7, window_bounds = array<i64: 1, 8>}]} {
    %c0 = arith.constant 0 : index
    %c0_0 = arith.constant 0 : index
    %0 = vector.load %arg1[%c0, %c0_0] : memref<8x32xf32, #tpu.memory_space<vmem>>, vector<8x32xf32>
    %c0_1 = arith.constant 0 : index
    %c0_2 = arith.constant 0 : index
    %1 = vector.load %arg4[%c0_1, %c0_2] : memref<128x128xf32, #tpu.memory_space<vmem>>, vector<128x128xf32>
    %c0_3 = arith.constant 0 : index
    %c0_4 = arith.constant 0 : index
    %2 = vector.load %arg5[%c0_3, %c0_4] : memref<1x128xf32, #tpu.memory_space<vmem>>, vector<1x128xf32>
    %c0_5 = arith.constant 0 : index
    %c0_6 = arith.constant 0 : index
    %3 = vector.load %arg2[%c0_5, %c0_6] : memref<32x128xf32, #tpu.memory_space<vmem>>, vector<32x128xf32>
    %cst = arith.constant dense<0.000000e+00> : vector<8x128xf32>
    %4 = tpu.matmul %0, %3, %cst {dimension_numbers = #tpu.dot_dimension_numbers<[1], [0], [0], [1], [0, 0, 1, 1], [], []>} : vector<8x32xf32>, vector<32x128xf32>, vector<8x128xf32> -> vector<8x128xf32>
    %c0_7 = arith.constant 0 : index
    %c0_8 = arith.constant 0 : index
    %5 = vector.load %arg3[%c0_7, %c0_8] : memref<1x128xf32, #tpu.memory_space<vmem>>, vector<1x128xf32>
    %6 = vector.broadcast %5 : vector<1x128xf32> to vector<8x128xf32>
    %7 = arith.addf %4, %6 : vector<8x128xf32>
    %cst_9 = arith.constant 0.000000e+00 : f32
    %8 = vector.broadcast %cst_9 : f32 to vector<8x128xf32>
    %9 = arith.maximumf %7, %8 : vector<8x128xf32>
    %cst_10 = arith.constant dense<0.000000e+00> : vector<8x128xf32>
    %10 = tpu.matmul %9, %1, %cst_10 {dimension_numbers = #tpu.dot_dimension_numbers<[1], [0], [0], [1], [0, 0, 1, 1], [], []>} : vector<8x128xf32>, vector<128x128xf32>, vector<8x128xf32> -> vector<8x128xf32>
    %11 = vector.broadcast %2 : vector<1x128xf32> to vector<8x128xf32>
    %12 = arith.addf %10, %11 : vector<8x128xf32>
    %cst_11 = arith.constant 0.000000e+00 : f32
    %13 = vector.broadcast %cst_11 : f32 to vector<8x128xf32>
    %14 = arith.maximumf %12, %13 : vector<8x128xf32>
    %cst_12 = arith.constant dense<0.000000e+00> : vector<8x128xf32>
    %15 = tpu.matmul %14, %1, %cst_12 {dimension_numbers = #tpu.dot_dimension_numbers<[1], [0], [0], [1], [0, 0, 1, 1], [], []>} : vector<8x128xf32>, vector<128x128xf32>, vector<8x128xf32> -> vector<8x128xf32>
    %16 = vector.broadcast %2 : vector<1x128xf32> to vector<8x128xf32>
    %17 = arith.addf %15, %16 : vector<8x128xf32>
    %cst_13 = arith.constant 0.000000e+00 : f32
    %18 = vector.broadcast %cst_13 : f32 to vector<8x128xf32>
    %19 = arith.maximumf %17, %18 : vector<8x128xf32>
    %cst_14 = arith.constant dense<0.000000e+00> : vector<8x128xf32>
    %20 = tpu.matmul %19, %1, %cst_14 {dimension_numbers = #tpu.dot_dimension_numbers<[1], [0], [0], [1], [0, 0, 1, 1], [], []>} : vector<8x128xf32>, vector<128x128xf32>, vector<8x128xf32> -> vector<8x128xf32>
    %21 = vector.broadcast %2 : vector<1x128xf32> to vector<8x128xf32>
    %22 = arith.addf %20, %21 : vector<8x128xf32>
    %cst_15 = arith.constant 0.000000e+00 : f32
    %23 = vector.broadcast %cst_15 : f32 to vector<8x128xf32>
    %24 = arith.maximumf %22, %23 : vector<8x128xf32>
    %c0_16 = arith.constant 0 : index
    %c0_17 = arith.constant 0 : index
    %25 = vector.load %arg6[%c0_16, %c0_17] : memref<1x128xf32, #tpu.memory_space<vmem>>, vector<1x128xf32>
    "tpu.trace_start"() <{level = 10 : i32, message = "of,bf->ob"}> : () -> ()
    %cst_18 = arith.constant dense<0.000000e+00> : vector<1x8xf32>
    %26 = tpu.matmul %25, %24, %cst_18 {dimension_numbers = #tpu.dot_dimension_numbers<[1], [1], [0], [0], [0, 0, 1, 0], [], []>} : vector<1x128xf32>, vector<8x128xf32>, vector<1x8xf32> -> vector<1x8xf32>
    "tpu.trace_stop"() : () -> ()
    %c0_19 = arith.constant 0 : index
    %c0_20 = arith.constant 0 : index
    %27 = vector.load %arg7[%c0_19, %c0_20] : memref<1x1xf32, #tpu.memory_space<vmem>>, vector<1x1xf32>
    %28 = vector.extract %27[0, 0] : f32 from vector<1x1xf32>
    %29 = vector.broadcast %28 : f32 to vector<1x8xf32>
    %30 = arith.addf %26, %29 : vector<1x8xf32>
    %c0_21 = arith.constant 0 : index
    %c0_22 = arith.constant 0 : index
    %31 = vector.load %arg8[%c0_21, %c0_22] : memref<1x8xf32, #tpu.memory_space<vmem>>, vector<1x8xf32>
    tpu.vector_store %arg8[%c0_21, %c0_22], %30 {strides = array<i32>} : memref<1x8xf32, #tpu.memory_space<vmem>>, vector<1x8xf32>,
    return
  }
  func.func @transform_0(%arg0: i32) -> (i32, i32) {
    %c0_i32 = arith.constant 0 : i32
    %c0_i32_0 = arith.constant 0 : i32
    return %arg0, %c0_i32 : i32, i32
  }
  func.func @transform_1(%arg0: i32) -> (i32, i32) {
    %c0_i32 = arith.constant 0 : i32
    %c0_i32_0 = arith.constant 0 : i32
    %c0_i32_1 = arith.constant 0 : i32
    return %c0_i32, %c0_i32_0 : i32, i32
  }
  func.func @transform_2(%arg0: i32) -> (i32, i32) {
    %c0_i32 = arith.constant 0 : i32
    %c0_i32_0 = arith.constant 0 : i32
    %c0_i32_1 = arith.constant 0 : i32
    return %c0_i32, %c0_i32_0 : i32, i32
  }
  func.func @transform_3(%arg0: i32) -> (i32, i32) {
    %c0_i32 = arith.constant 0 : i32
    %c0_i32_0 = arith.constant 0 : i32
    %c0_i32_1 = arith.constant 0 : i32
    return %c0_i32, %c0_i32_0 : i32, i32
  }
  func.func @transform_4(%arg0: i32) -> (i32, i32) {
    %c0_i32 = arith.constant 0 : i32
    %c0_i32_0 = arith.constant 0 : i32
    %c0_i32_1 = arith.constant 0 : i32
    return %c0_i32, %c0_i32_0 : i32, i32
  }
  func.func @transform_5(%arg0: i32) -> (i32, i32) {
    %c0_i32 = arith.constant 0 : i32
    %c0_i32_0 = arith.constant 0 : i32
    %c0_i32_1 = arith.constant 0 : i32
    return %c0_i32, %c0_i32_0 : i32, i32
  }
  func.func @transform_6(%arg0: i32) -> (i32, i32) {
    %c0_i32 = arith.constant 0 : i32
    %c0_i32_0 = arith.constant 0 : i32
    %c0_i32_1 = arith.constant 0 : i32
    return %c0_i32, %c0_i32_0 : i32, i32
  }
  func.func @transform_7(%arg0: i32) -> (i32, i32) {
    %c0_i32 = arith.constant 0 : i32
    %c0_i32_0 = arith.constant 0 : i32
    return %c0_i32, %arg0 : i32, i32
  }
}

</mosaic_0001>

<llo_original>
// kernel: tpu_custom_call.1
$region0: #{tpu_custom_call.1}
  #allocation0 [shape = 'u32[]', space=smem, size = 0x4, offset = 0x4, fixed_abs, tag = 'smem constant byte address 0x4 - core index']
  #allocation1 [shape = 'u32[144,128]{1,0:T(1,128)}', space=vmem, size = 0x12000, scoped, tag = 'internal scratch']
  #allocation2 [shape = 'f32[1,1]{1,0:T(1,128)S(1)}', space=vmem, size = 0x200, scoped, tag = 'scoped memory for tpu_custom_call.1']
  %s0 = inlined_call_operand.hbm [shape: f32[8,32], index: 0, kind: input, shape index: {}]
  %s1 = inlined_call_operand.hbm [shape: f32[32,128], index: 1, kind: input, shape index: {}]
  %s2 = inlined_call_operand.vmem [shape: f32[1,128], index: 2, kind: input, shape index: {}]
  %s3 = inlined_call_operand.hbm [shape: f32[128,128], index: 3, kind: input, shape index: {}]
  %s4 = inlined_call_operand.vmem [shape: f32[1,128], index: 4, kind: input, shape index: {}]
  %s5 = inlined_call_operand.vmem [shape: f32[1,128], index: 5, kind: input, shape index: {}]
  %s6 = inlined_call_operand.<no memory space> [shape: f32[1,1], index: 6, kind: input, shape index: {}]
  %s7 = inlined_call_operand.hbm [shape: f32[1,8], index: 7, kind: output, shape index: {}]
  %s8 = sld [smem:[#allocation0]]
  $region50: #{tpu_custom_call.1} parent=0
    _
  %s10 = ssub.s32 1, %s8
  %s11 = scalar_select 0, %s10, %s8
  %v12 = vstv %s6
  %13 = vst [vmem:[#allocation2] sm:$0x1] %v12
  $region1: #{tpu_custom_call.1} parent=0
    #allocation3 [shape = 'u8[4096]{0}', space=vmem, size = 0x1000, scoped, tag = 'input window, operand 0, single buffered']
    #allocation4 [shape = 's32[1]{0}', space=sflag, size = 0x4, scoped, tag = 'scoped memory for tpu_custom_call.1']
    #allocation5 [shape = 's32[1]{0}', space=sflag, size = 0x4, scoped, tag = 'scoped memory for tpu_custom_call.1']
    #allocation6 [shape = 'u8[16384]{0}', space=vmem, size = 0x4000, scoped, tag = 'input window, operand 1, single buffered']
    #allocation7 [shape = 's32[1]{0}', space=sflag, size = 0x4, scoped, tag = 'scoped memory for tpu_custom_call.1']
    #allocation8 [shape = 'u8[65536]{0}', space=vmem, size = 0x10000, scoped, tag = 'input window, operand 3, single buffered']
    #allocation9 [shape = 'u8[512]{0}', space=vmem, size = 0x400, scoped, tag = 'output window, operand 0, single buffered']
    %14 = vsyncpa [#allocation4], 0
    %15 = vsyncpa [#allocation7], 0
    %16 = vsyncpa [#allocation5], 0
    // Predicated region
    $region2: #{tpu_custom_call.1} parent=1 // pred_check
      _
    $region3: #{tpu_custom_call.1} parent=1 // pred_check_branch
      %18 = sbr.rel (0) target = $region5
    $region4: #{tpu_custom_call.1} parent=1 // pred_region
      %s20 = ssub.s32 128, 128
      %21 = vsyncadd [#allocation4], %s20
      %s23 = sshll.u32 [#allocation3], 4
      %s24 = int_to_ptr.vmem [resolvable:$true] %s23
      %26 = dma.hbm_to_vmem [thread:$0]  %s0, 128, %s24, [#allocation4]
    $region5: #{tpu_custom_call.1} parent=1 // pred_fallthru
      _
    // Predicated region
    $region6: #{tpu_custom_call.1} parent=1 // pred_check
      _
    $region7: #{tpu_custom_call.1} parent=1 // pred_check_branch
      %28 = sbr.rel (0) target = $region9
    $region8: #{tpu_custom_call.1} parent=1 // pred_region
      %s30 = ssub.s32 512, 512
      %31 = vsyncadd [#allocation7], %s30
      %s32 = sshll.u32 [#allocation6], 4
      %s33 = int_to_ptr.vmem [resolvable:$true] %s32
      %38 = dma.hbm_to_vmem [thread:$0]  %s1, 512, %s33, [#allocation7], 128, 128, 8
    $region9: #{tpu_custom_call.1} parent=1 // pred_fallthru
      _
    // Predicated region
    $region10: #{tpu_custom_call.1} parent=1 // pred_check
      _
    $region11: #{tpu_custom_call.1} parent=1 // pred_check_branch
      %40 = sbr.rel (0) target = $region13
    $region12: #{tpu_custom_call.1} parent=1 // pred_region
      _
    $region13: #{tpu_custom_call.1} parent=1 // pred_fallthru
      _
    // Predicated region
    $region14: #{tpu_custom_call.1} parent=1 // pred_check
      _
    $region15: #{tpu_custom_call.1} parent=1 // pred_check_branch
      %42 = sbr.rel (0) target = $region17
    $region16: #{tpu_custom_call.1} parent=1 // pred_region
      %s44 = ssub.s32 2048, 2048
      %45 = vsyncadd [#allocation7], %s44
      %s46 = sshll.u32 [#allocation8], 4
      %s47 = int_to_ptr.vmem [resolvable:$true] %s46
      %52 = dma.hbm_to_vmem [thread:$0]  %s3, 2048, %s47, [#allocation7], 128, 128, 8
    $region17: #{tpu_custom_call.1} parent=1 // pred_fallthru
      _
    // Predicated region
    $region18: #{tpu_custom_call.1} parent=1 // pred_check
      _
    $region19: #{tpu_custom_call.1} parent=1 // pred_check_branch
      %54 = sbr.rel (0) target = $region21
    $region20: #{tpu_custom_call.1} parent=1 // pred_region
      _
    $region21: #{tpu_custom_call.1} parent=1 // pred_fallthru
      _
    // Predicated region
    $region22: #{tpu_custom_call.1} parent=1 // pred_check
      _
    $region23: #{tpu_custom_call.1} parent=1 // pred_check_branch
      %56 = sbr.rel (0) target = $region25
    $region24: #{tpu_custom_call.1} parent=1 // pred_region
      _
    $region25: #{tpu_custom_call.1} parent=1 // pred_fallthru
      _
    // Predicated region
    $region26: #{tpu_custom_call.1} parent=1 // pred_check
      _
    $region27: #{tpu_custom_call.1} parent=1 // pred_check_branch
      %58 = sbr.rel (0) target = $region29
    $region28: #{tpu_custom_call.1} parent=1 // pred_region
      _
    $region29: #{tpu_custom_call.1} parent=1 // pred_fallthru
      _
    // Predicated region
    $region30: #{tpu_custom_call.1} parent=1 // pred_check
      _
    $region31: #{tpu_custom_call.1} parent=1 // pred_check_branch
      %60 = sbr.rel (0) target = $region33
    $region32: #{tpu_custom_call.1} parent=1 // pred_region
      %61 = dma.done [#allocation4], 128
    $region33: #{tpu_custom_call.1} parent=1 // pred_fallthru
      _
    // Predicated region
    $region34: #{tpu_custom_call.1} parent=1 // pred_check
      _
    $region35: #{tpu_custom_call.1} parent=1 // pred_check_branch
      %63 = sbr.rel (0) target = $region37
    $region36: #{tpu_custom_call.1} parent=1 // pred_region
      %64 = dma.done [#allocation7], 512
    $region37: #{tpu_custom_call.1} parent=1 // pred_fallthru
      _
    // Predicated region
    $region38: #{tpu_custom_call.1} parent=1 // pred_check
      _
    $region39: #{tpu_custom_call.1} parent=1 // pred_check_branch
      %66 = sbr.rel (0) target = $region41
    $region40: #{tpu_custom_call.1} parent=1 // pred_region
      %67 = dma.done [#allocation7], 2048
    $region41: #{tpu_custom_call.1} parent=1 // pred_fallthru
      _
    %v68 = vld [vmem:[#allocation3] sm:$0xff]
    %v69 = vld [vmem:[#allocation8] sm:$0xff]
    %v70 = vld [vmem:[#allocation8 + $0x8] sm:$0xff]
    %v71 = vld [vmem:[#allocation8 + $0x10] sm:$0xff]
    %v72 = vld [vmem:[#allocation8 + $0x18] sm:$0xff]
    %v73 = vld [vmem:[#allocation8 + $0x20] sm:$0xff]
    %v74 = vld [vmem:[#allocation8 + $0x28] sm:$0xff]
    %v75 = vld [vmem:[#allocation8 + $0x30] sm:$0xff]
    %v76 = vld [vmem:[#allocation8 + $0x38] sm:$0xff]
    %v77 = vld [vmem:[#allocation8 + $0x40] sm:$0xff]
    %v78 = vld [vmem:[#allocation8 + $0x48] sm:$0xff]
    %v79 = vld [vmem:[#allocation8 + $0x50] sm:$0xff]
    %v80 = vld [vmem:[#allocation8 + $0x58] sm:$0xff]
    %v81 = vld [vmem:[#allocation8 + $0x60] sm:$0xff]
    %v82 = vld [vmem:[#allocation8 + $0x68] sm:$0xff]
    %v83 = vld [vmem:[#allocation8 + $0x70] sm:$0xff]
    %v84 = vld [vmem:[#allocation8 + $0x78] sm:$0xff]
    %v85 = vld [vmem:[%s4] sm:$0x1]
    %v86 = vld [vmem:[#allocation6] sm:$0xff]
    %v87 = vld [vmem:[#allocation6 + $0x8] sm:$0xff]
    %v88 = vld [vmem:[#allocation6 + $0x10] sm:$0xff]
    %v89 = vld [vmem:[#allocation6 + $0x18] sm:$0xff]
    %v90 = vld [vmem:[%s2] sm:$0x1]
    %v92 = vlaneseq
    %v93 = vshrl.u32 %v92, 7
    %v94 = vsub.s32 0, %v93
    %v95 = vrot.slane %v90, %v94
    %vm97 = vcmask 261120
    %v99 = vsel %vm97, %v68, 0
    %101 = vmatprep.subr.mxu0 0.0
    %102 = vmatpush1.msra.mxu0 0.0
    %103 = vmatprep.subr.mxu0 0.0
    %104 = vmatpush1.msra.mxu0 0.0
    %105 = vmatprep.subr.mxu0 0.0
    %106 = vmatpush1.msra.mxu0 0.0
    %107 = vmatprep.subr.mxu0 0.0
    %108 = vmatpush1.msra.mxu0 0.0
    %109 = vmatprep.subr.mxu0 0.0
    %110 = vmatpush1.msra.mxu0 0.0
    %111 = vmatprep.subr.mxu0 0.0
    %112 = vmatpush1.msra.mxu0 0.0
    %113 = vmatprep.subr.mxu0 0.0
    %114 = vmatpush1.msra.mxu0 0.0
    %115 = vmatprep.subr.mxu0 0.0
    %116 = vmatpush1.msra.mxu0 0.0
    %117 = vmatprep.subr.mxu0 0.0
    %118 = vmatpush1.msra.mxu0 0.0
    %119 = vmatprep.subr.mxu0 0.0
    %120 = vmatpush1.msra.mxu0 0.0
    %121 = vmatprep.subr.mxu0 0.0
    %122 = vmatpush1.msra.mxu0 0.0
    %123 = vmatprep.subr.mxu0 0.0
    %124 = vmatpush1.msra.mxu0 0.0
    %125 = vmatprep.subr.mxu0 0.0
    %126 = vmatpush1.msra.mxu0 %v89
    %127 = vmatprep.subr.mxu0 0.0
    %128 = vmatpush1.msra.mxu0 %v88
    %129 = vmatprep.subr.mxu0 0.0
    %130 = vmatpush1.msra.mxu0 %v87
    %131 = vmatprep.subr.mxu0 0.0
    %132 = vmatpush1.msra.mxu0 %v86
    %133 = vmatprep.subr.mxu0 0.0
    %134 = vmatpush2.msra.mxu0 0.0
    %135 = vmatprep.subr.mxu0 0.0
    %136 = vmatpush2.msra.mxu0 0.0
    %137 = vmatprep.subr.mxu0 0.0
    %138 = vmatpush2.msra.mxu0 0.0
    %139 = vmatprep.subr.mxu0 0.0
    %140 = vmatpush2.msra.mxu0 0.0
    %141 = vmatprep.subr.mxu0 0.0
    %142 = vmatpush2.msra.mxu0 0.0
    %143 = vmatprep.subr.mxu0 0.0
    %144 = vmatpush2.msra.mxu0 0.0
    %145 = vmatprep.subr.mxu0 0.0
    %146 = vmatpush2.msra.mxu0 0.0
    %147 = vmatprep.subr.mxu0 0.0
    %148 = vmatpush2.msra.mxu0 0.0
    %149 = vmatprep.subr.mxu0 0.0
    %150 = vmatpush2.msra.mxu0 0.0
    %151 = vmatprep.subr.mxu0 0.0
    %152 = vmatpush2.msra.mxu0 0.0
    %153 = vmatprep.subr.mxu0 0.0
    %154 = vmatpush2.msra.mxu0 0.0
    %155 = vmatprep.subr.mxu0 0.0
    %156 = vmatpush2.msra.mxu0 0.0
    %157 = vmatprep.subr.mxu0 0.0
    %158 = vmatpush2.msra.mxu0 0.0
    %159 = vmatprep.subr.mxu0 0.0
    %160 = vmatpush2.msra.mxu0 0.0
    %161 = vmatprep.subr.mxu0 0.0
    %162 = vmatpush2.msra.mxu0 0.0
    %163 = vmatprep.subr.mxu0 0.0
    %164 = vmatpush2.msra.mxu0 0.0
    %165 = vmatprep.mubr.f32.mxu0 0.0
    %166 = vmatmul.mubr.f32.gmra.mxu0 %v99
    %v167 = vpop.f32.mrf.mxu0
    %v168 = vadd.f32 %v95, %v167
    %v169 = vpop.f32.mrf.mxu0
    %170 = vdwg.mxu0
    %v171 = vmax.f32 %v168, 0.0
    %v173 = vlaneseq
    %v174 = vshrl.u32 %v173, 7
    %v175 = vsub.s32 0, %v174
    %v176 = vrot.slane %v85, %v175
    %178 = vmatprep.subr.mxu0 0.0
    %179 = vmatpush1.msra.mxu0 %v84
    %180 = vmatprep.subr.mxu0 0.0
    %181 = vmatpush1.msra.mxu0 %v83
    %182 = vmatprep.subr.mxu0 0.0
    %183 = vmatpush1.msra.mxu0 %v82
    %184 = vmatprep.subr.mxu0 0.0
    %185 = vmatpush1.msra.mxu0 %v81
    %186 = vmatprep.subr.mxu0 0.0
    %187 = vmatpush1.msra.mxu0 %v80
    %188 = vmatprep.subr.mxu0 0.0
    %189 = vmatpush1.msra.mxu0 %v79
    %190 = vmatprep.subr.mxu0 0.0
    %191 = vmatpush1.msra.mxu0 %v78
    %192 = vmatprep.subr.mxu0 0.0
    %193 = vmatpush1.msra.mxu0 %v77
    %194 = vmatprep.subr.mxu0 0.0
    %195 = vmatpush1.msra.mxu0 %v76
    %196 = vmatprep.subr.mxu0 0.0
    %197 = vmatpush1.msra.mxu0 %v75
    %198 = vmatprep.subr.mxu0 0.0
    %199 = vmatpush1.msra.mxu0 %v74
    %200 = vmatprep.subr.mxu0 0.0
    %201 = vmatpush1.msra.mxu0 %v73
    %202 = vmatprep.subr.mxu0 0.0
    %203 = vmatpush1.msra.mxu0 %v72
    %204 = vmatprep.subr.mxu0 0.0
    %205 = vmatpush1.msra.mxu0 %v71
    %206 = vmatprep.subr.mxu0 0.0
    %207 = vmatpush1.msra.mxu0 %v70
    %208 = vmatprep.subr.mxu0 0.0
    %209 = vmatpush1.msra.mxu0 %v69
    %210 = vmatprep.subr.mxu0 0.0
    %211 = vmatpush2.msra.mxu0 0.0
    %212 = vmatprep.subr.mxu0 0.0
    %213 = vmatpush2.msra.mxu0 0.0
    %214 = vmatprep.subr.mxu0 0.0
    %215 = vmatpush2.msra.mxu0 0.0
    %216 = vmatprep.subr.mxu0 0.0
    %217 = vmatpush2.msra.mxu0 0.0
    %218 = vmatprep.subr.mxu0 0.0
    %219 = vmatpush2.msra.mxu0 0.0
    %220 = vmatprep.subr.mxu0 0.0
    %221 = vmatpush2.msra.mxu0 0.0
    %222 = vmatprep.subr.mxu0 0.0
    %223 = vmatpush2.msra.mxu0 0.0
    %224 = vmatprep.subr.mxu0 0.0
    %225 = vmatpush2.msra.mxu0 0.0
    %226 = vmatprep.subr.mxu0 0.0
    %227 = vmatpush2.msra.mxu0 0.0
    %228 = vmatprep.subr.mxu0 0.0
    %229 = vmatpush2.msra.mxu0 0.0
    %230 = vmatprep.subr.mxu0 0.0
    %231 = vmatpush2.msra.mxu0 0.0
    %232 = vmatprep.subr.mxu0 0.0
    %233 = vmatpush2.msra.mxu0 0.0
    %234 = vmatprep.subr.mxu0 0.0
    %235 = vmatpush2.msra.mxu0 0.0
    %236 = vmatprep.subr.mxu0 0.0
    %237 = vmatpush2.msra.mxu0 0.0
    %238 = vmatprep.subr.mxu0 0.0
    %239 = vmatpush2.msra.mxu0 0.0
    %240 = vmatprep.subr.mxu0 0.0
    %241 = vmatpush2.msra.mxu0 0.0
    %242 = vmatprep.mubr.f32.mxu0 0.0
    %243 = vmatmul.mubr.f32.gmra.mxu0 %v171
    %v244 = vpop.f32.mrf.mxu0
    %v245 = vadd.f32 %v176, %v244
    %v246 = vpop.f32.mrf.mxu0
    %247 = vdwg.mxu0
    %v248 = vmax.f32 %v245, 0.0
    %249 = vmatprep.subr.mxu0 0.0
    %250 = vmatpush1.msra.mxu0 %v84
    %251 = vmatprep.subr.mxu0 0.0
    %252 = vmatpush1.msra.mxu0 %v83
    %253 = vmatprep.subr.mxu0 0.0
    %254 = vmatpush1.msra.mxu0 %v82
    %255 = vmatprep.subr.mxu0 0.0
    %256 = vmatpush1.msra.mxu0 %v81
    %257 = vmatprep.subr.mxu0 0.0
    %258 = vmatpush1.msra.mxu0 %v80
    %259 = vmatprep.subr.mxu0 0.0
    %260 = vmatpush1.msra.mxu0 %v79
    %261 = vmatprep.subr.mxu0 0.0
    %262 = vmatpush1.msra.mxu0 %v78
    %263 = vmatprep.subr.mxu0 0.0
    %264 = vmatpush1.msra.mxu0 %v77
    %265 = vmatprep.subr.mxu0 0.0
    %266 = vmatpush1.msra.mxu0 %v76
    %267 = vmatprep.subr.mxu0 0.0
    %268 = vmatpush1.msra.mxu0 %v75
    %269 = vmatprep.subr.mxu0 0.0
    %270 = vmatpush1.msra.mxu0 %v74
    %271 = vmatprep.subr.mxu0 0.0
    %272 = vmatpush1.msra.mxu0 %v73
    %273 = vmatprep.subr.mxu0 0.0
    %274 = vmatpush1.msra.mxu0 %v72
    %275 = vmatprep.subr.mxu0 0.0
    %276 = vmatpush1.msra.mxu0 %v71
    %277 = vmatprep.subr.mxu0 0.0
    %278 = vmatpush1.msra.mxu0 %v70
    %279 = vmatprep.subr.mxu0 0.0
    %280 = vmatpush1.msra.mxu0 %v69
    %281 = vmatprep.subr.mxu0 0.0
    %282 = vmatpush2.msra.mxu0 0.0
    %283 = vmatprep.subr.mxu0 0.0
    %284 = vmatpush2.msra.mxu0 0.0
    %285 = vmatprep.subr.mxu0 0.0
    %286 = vmatpush2.msra.mxu0 0.0
    %287 = vmatprep.subr.mxu0 0.0
    %288 = vmatpush2.msra.mxu0 0.0
    %289 = vmatprep.subr.mxu0 0.0
    %290 = vmatpush2.msra.mxu0 0.0
    %291 = vmatprep.subr.mxu0 0.0
    %292 = vmatpush2.msra.mxu0 0.0
    %293 = vmatprep.subr.mxu0 0.0
    %294 = vmatpush2.msra.mxu0 0.0
    %295 = vmatprep.subr.mxu0 0.0
    %296 = vmatpush2.msra.mxu0 0.0
    %297 = vmatprep.subr.mxu0 0.0
    %298 = vmatpush2.msra.mxu0 0.0
    %299 = vmatprep.subr.mxu0 0.0
    %300 = vmatpush2.msra.mxu0 0.0
    %301 = vmatprep.subr.mxu0 0.0
    %302 = vmatpush2.msra.mxu0 0.0
    %303 = vmatprep.subr.mxu0 0.0
    %304 = vmatpush2.msra.mxu0 0.0
    %305 = vmatprep.subr.mxu0 0.0
    %306 = vmatpush2.msra.mxu0 0.0
    %307 = vmatprep.subr.mxu0 0.0
    %308 = vmatpush2.msra.mxu0 0.0
    %309 = vmatprep.subr.mxu0 0.0
    %310 = vmatpush2.msra.mxu0 0.0
    %311 = vmatprep.subr.mxu0 0.0
    %312 = vmatpush2.msra.mxu0 0.0
    %313 = vmatprep.mubr.f32.mxu0 0.0
    %314 = vmatmul.mubr.f32.gmra.mxu0 %v248
    %v315 = vpop.f32.mrf.mxu0
    %v316 = vadd.f32 %v176, %v315
    %v317 = vpop.f32.mrf.mxu0
    %318 = vdwg.mxu0
    %v319 = vmax.f32 %v316, 0.0
    %320 = vmatprep.subr.mxu0 0.0
    %321 = vmatpush1.msra.mxu0 %v84
    %322 = vmatprep.subr.mxu0 0.0
    %323 = vmatpush1.msra.mxu0 %v83
    %324 = vmatprep.subr.mxu0 0.0
    %325 = vmatpush1.msra.mxu0 %v82
    %326 = vmatprep.subr.mxu0 0.0
    %327 = vmatpush1.msra.mxu0 %v81
    %328 = vmatprep.subr.mxu0 0.0
    %329 = vmatpush1.msra.mxu0 %v80
    %330 = vmatprep.subr.mxu0 0.0
    %331 = vmatpush1.msra.mxu0 %v79
    %332 = vmatprep.subr.mxu0 0.0
    %333 = vmatpush1.msra.mxu0 %v78
    %334 = vmatprep.subr.mxu0 0.0
    %335 = vmatpush1.msra.mxu0 %v77
    %336 = vmatprep.subr.mxu0 0.0
    %337 = vmatpush1.msra.mxu0 %v76
    %338 = vmatprep.subr.mxu0 0.0
    %339 = vmatpush1.msra.mxu0 %v75
    %340 = vmatprep.subr.mxu0 0.0
    %341 = vmatpush1.msra.mxu0 %v74
    %342 = vmatprep.subr.mxu0 0.0
    %343 = vmatpush1.msra.mxu0 %v73
    %344 = vmatprep.subr.mxu0 0.0
    %345 = vmatpush1.msra.mxu0 %v72
    %346 = vmatprep.subr.mxu0 0.0
    %347 = vmatpush1.msra.mxu0 %v71
    %348 = vmatprep.subr.mxu0 0.0
    %349 = vmatpush1.msra.mxu0 %v70
    %350 = vmatprep.subr.mxu0 0.0
    %351 = vmatpush1.msra.mxu0 %v69
    %352 = vmatprep.subr.mxu0 0.0
    %353 = vmatpush2.msra.mxu0 0.0
    %354 = vmatprep.subr.mxu0 0.0
    %355 = vmatpush2.msra.mxu0 0.0
    %356 = vmatprep.subr.mxu0 0.0
    %357 = vmatpush2.msra.mxu0 0.0
    %358 = vmatprep.subr.mxu0 0.0
    %359 = vmatpush2.msra.mxu0 0.0
    %360 = vmatprep.subr.mxu0 0.0
    %361 = vmatpush2.msra.mxu0 0.0
    %362 = vmatprep.subr.mxu0 0.0
    %363 = vmatpush2.msra.mxu0 0.0
    %364 = vmatprep.subr.mxu0 0.0
    %365 = vmatpush2.msra.mxu0 0.0
    %366 = vmatprep.subr.mxu0 0.0
    %367 = vmatpush2.msra.mxu0 0.0
    %368 = vmatprep.subr.mxu0 0.0
    %369 = vmatpush2.msra.mxu0 0.0
    %370 = vmatprep.subr.mxu0 0.0
    %371 = vmatpush2.msra.mxu0 0.0
    %372 = vmatprep.subr.mxu0 0.0
    %373 = vmatpush2.msra.mxu0 0.0
    %374 = vmatprep.subr.mxu0 0.0
    %375 = vmatpush2.msra.mxu0 0.0
    %376 = vmatprep.subr.mxu0 0.0
    %377 = vmatpush2.msra.mxu0 0.0
    %378 = vmatprep.subr.mxu0 0.0
    %379 = vmatpush2.msra.mxu0 0.0
    %380 = vmatprep.subr.mxu0 0.0
    %381 = vmatpush2.msra.mxu0 0.0
    %382 = vmatprep.subr.mxu0 0.0
    %383 = vmatpush2.msra.mxu0 0.0
    %384 = vmatprep.mubr.f32.mxu0 0.0
    %385 = vmatmul.mubr.f32.gmra.mxu0 %v319
    %v386 = vpop.f32.mrf.mxu0
    %v387 = vadd.f32 %v176, %v386
    %v388 = vpop.f32.mrf.mxu0
    %389 = vdwg.mxu0
    %v390 = vmax.f32 %v387, 0.0
    %v391 = vld [vmem:[%s5] sm:$0x1]
    %v392 = vld [vmem:[#allocation2] sm:$0x1]
    %s393 = vtos %v392
    %v394 = vstv %s393
    %395 = vmatprep.subr.mxu0 0.0
    %396 = vmatpush1.xpose.msra.mxu0 0.0
    %397 = vmatprep.subr.mxu0 0.0
    %398 = vmatpush1.xpose.msra.mxu0 0.0
    %399 = vmatprep.subr.mxu0 0.0
    %400 = vmatpush1.xpose.msra.mxu0 0.0
    %401 = vmatprep.subr.mxu0 0.0
    %402 = vmatpush1.xpose.msra.mxu0 0.0
    %403 = vmatprep.subr.mxu0 0.0
    %404 = vmatpush1.xpose.msra.mxu0 0.0
    %405 = vmatprep.subr.mxu0 0.0
    %406 = vmatpush1.xpose.msra.mxu0 0.0
    %407 = vmatprep.subr.mxu0 0.0
    %408 = vmatpush1.xpose.msra.mxu0 0.0
    %409 = vmatprep.subr.mxu0 0.0
    %410 = vmatpush1.xpose.msra.mxu0 0.0
    %411 = vmatprep.subr.mxu0 0.0
    %412 = vmatpush1.xpose.msra.mxu0 0.0
    %413 = vmatprep.subr.mxu0 0.0
    %414 = vmatpush1.xpose.msra.mxu0 0.0
    %415 = vmatprep.subr.mxu0 0.0
    %416 = vmatpush1.xpose.msra.mxu0 0.0
    %417 = vmatprep.subr.mxu0 0.0
    %418 = vmatpush1.xpose.msra.mxu0 0.0
    %419 = vmatprep.subr.mxu0 0.0
    %420 = vmatpush1.xpose.msra.mxu0 0.0
    %421 = vmatprep.subr.mxu0 0.0
    %422 = vmatpush1.xpose.msra.mxu0 0.0
    %423 = vmatprep.subr.mxu0 0.0
    %424 = vmatpush1.xpose.msra.mxu0 0.0
    %425 = vmatprep.subr.mxu0 0.0
    %426 = vmatpush1.xpose.msra.mxu0 %v390
    %427 = vmatprep.subr.mxu0 0.0
    %428 = vmatpush2.xpose.msra.mxu0 0.0
    %429 = vmatprep.subr.mxu0 0.0
    %430 = vmatpush2.xpose.msra.mxu0 0.0
    %431 = vmatprep.subr.mxu0 0.0
    %432 = vmatpush2.xpose.msra.mxu0 0.0
    %433 = vmatprep.subr.mxu0 0.0
    %434 = vmatpush2.xpose.msra.mxu0 0.0
    %435 = vmatprep.subr.mxu0 0.0
    %436 = vmatpush2.xpose.msra.mxu0 0.0
    %437 = vmatprep.subr.mxu0 0.0
    %438 = vmatpush2.xpose.msra.mxu0 0.0
    %439 = vmatprep.subr.mxu0 0.0
    %440 = vmatpush2.xpose.msra.mxu0 0.0
    %441 = vmatprep.subr.mxu0 0.0
    %442 = vmatpush2.xpose.msra.mxu0 0.0
    %443 = vmatprep.subr.mxu0 0.0
    %444 = vmatpush2.xpose.msra.mxu0 0.0
    %445 = vmatprep.subr.mxu0 0.0
    %446 = vmatpush2.xpose.msra.mxu0 0.0
    %447 = vmatprep.subr.mxu0 0.0
    %448 = vmatpush2.xpose.msra.mxu0 0.0
    %449 = vmatprep.subr.mxu0 0.0
    %450 = vmatpush2.xpose.msra.mxu0 0.0
    %451 = vmatprep.subr.mxu0 0.0
    %452 = vmatpush2.xpose.msra.mxu0 0.0
    %453 = vmatprep.subr.mxu0 0.0
    %454 = vmatpush2.xpose.msra.mxu0 0.0
    %455 = vmatprep.subr.mxu0 0.0
    %456 = vmatpush2.xpose.msra.mxu0 0.0
    %457 = vmatprep.subr.mxu0 0.0
    %458 = vmatpush2.xpose.msra.mxu0 0.0
    %459 = vmatprep.mubr.f32.mxu0 0.0
    %460 = vmatmul.mubr.f32.gmra.mxu0 %v391
    %v461 = vpop.f32.mrf.mxu0
    %v462 = vadd.f32 %v394, %v461
    %v463 = vpop.f32.mrf.mxu0
    %464 = vdwg.mxu0
    %vm465 = vcmask 57344
    %466 = vst.msk [vmem:[#allocation9] sm:$0x1] %vm465, %v462
    // Predicated region
    $region42: #{tpu_custom_call.1} parent=1 // pred_check
      _
    $region43: #{tpu_custom_call.1} parent=1 // pred_check_branch
      %468 = sbr.rel (0) target = $region45
    $region44: #{tpu_custom_call.1} parent=1 // pred_region
      %s470 = ssub.s32 16, 16
      %471 = vsyncadd [#allocation5], %s470
      %s473 = sshll.u32 [#allocation9], 4
      %s474 = int_to_ptr.vmem [resolvable:$true] %s473
      %476 = dma.vmem_to_hbm [thread:$0]  %s474, 16, %s7, [#allocation5]
    $region45: #{tpu_custom_call.1} parent=1 // pred_fallthru
      _
    // Predicated region
    $region46: #{tpu_custom_call.1} parent=1 // pred_check
      _
    $region47: #{tpu_custom_call.1} parent=1 // pred_check_branch
      %478 = sbr.rel (0) target = $region49
    $region48: #{tpu_custom_call.1} parent=1 // pred_region
      %479 = dma.done [#allocation5], 16
    $region49: #{tpu_custom_call.1} parent=1 // pred_fallthru
      _
    %480 = vsyncpa [#allocation4], 1
    %481 = vsyncpa [#allocation7], 1
    %482 = vsyncpa [#allocation5], 1

</llo_original>
